<compile_context>
chip_gen: v5e
topology: v5e:2x2
jax: 0.10.0
libtpu: 0.0.40
codegen_flags: <defaults>
</compile_context>

<pallas_src>
import math

import numpy as np
import jax
import jax.numpy as jnp
from jax.experimental import pallas as pl
from jax.experimental.pallas import tpu as pltpu


def ffn_kernel(x_ref, w1_ref, b1_ref, w2_ref, b2_ref, o_ref):
    # x_ref:  (TB, Dp) bf16   w1_ref: (Dp, TH) bf16   b1_ref: (1, TH) f32
    # w2_ref: (TH, Dp) bf16   b2_ref: (1, Dp)  f32    o_ref:  (TB, Dp) f32
    # o_ref's block index is (i, 0): it stays resident across the k (hidden)
    # grid axis and doubles as the f32 accumulator (no separate scratch).
    k = pl.program_id(1)

    # fc1 tile on the MXU (bf16 operands, f32 accumulate); bias + ReLU in f32.
    h = jnp.dot(x_ref[...], w1_ref[...], preferred_element_type=jnp.float32)
    h = jnp.maximum(h + b1_ref[...], 0.0)

    # fc2 partial product for this hidden tile (bf16 operands, f32 accumulate).
    p = jnp.dot(h.astype(w2_ref.dtype), w2_ref[...],
                preferred_element_type=jnp.float32)

    @pl.when(k == 0)
    def _():                 # init with the first partial product: no zero-fill
        o_ref[...] = p

    @pl.when(k != 0)
    def _():
        o_ref[...] += p

    @pl.when(k == pl.num_programs(1) - 1)
    def _():
        o_ref[...] += b2_ref[...]


def _round_up(x, m):
    return ((x + m - 1) // m) * m


def _vmem_budget_bytes():
    """Generation-aware opt-in VMEM limit (75% of physical, capped at 100 MiB).

    v5e/v6e: 128 MiB physical -> 96 MiB;  v7x: 64 MiB per TC -> 48 MiB.
    """
    phys = 128 * 1024 * 1024
    try:
        phys = int(pltpu.get_tpu_info().vmem_capacity_bytes)
    except Exception:
        pass
    return min((phys * 3) // 4, 100 * 1024 * 1024)


def _pick_tile(dim, align, max_tile):
    """Return (tile, padded_dim): tile % align == 0, tile <= max_tile, tile
    divides padded_dim, and pad waste is kept minimal (prefer exact divisors)."""
    max_tile = max(align, (max_tile // align) * align)
    dim_al = _round_up(dim, align)
    if dim_al <= max_tile:
        return dim_al, dim_al
    # Largest tile dividing the aligned dim exactly (zero pad waste), but not
    # smaller than half the requested tile (keeps arithmetic intensity up).
    for t in range(max_tile, align - 1, -align):
        if dim_al % t == 0 and 2 * t >= max_tile:
            return t, dim_al
    # Fall back: requested tile size, pad the dim up to a multiple of it.
    return max_tile, _round_up(dim, max_tile)


def _fit_tiles_to_vmem(tile_b, tile_h, d_pad, c_size, budget):
    """Shrink requested tiles until the double-buffered working set fits."""
    def est(tb, th):
        return 2 * (tb * d_pad * (c_size + 4)        # x (compute dtype) + f32 out
                    + 2 * d_pad * th * c_size        # W1 + W2 blocks
                    + (th + d_pad) * 4)              # biases
    while est(tile_b, tile_h) > budget and tile_b > 256:
        tile_b //= 2
    while est(tile_b, tile_h) > budget and tile_h > 128:
        tile_h //= 2
    while est(tile_b, tile_h) > budget and tile_b > 8:
        tile_b //= 2
    return tile_b, tile_h


def make_ffn(B, D_in, H, *, tile_b=1024, tile_h=512,
             compute_dtype=jnp.bfloat16, out_dtype=jnp.float32):
    """Build (prepare_params, forward) for a fixed-shape fused FFN.

    prepare_params(w1, b1, w2, b2): run ONCE -- pads/transposes/casts weights.
        w1: (H, D_in) = fc1.weight   b1: (H,)    w2: (D_in, H) = fc2.weight   b2: (D_in,)
    forward(x, params): per-call -- pads x, runs the fused kernel, un-pads.
    """
    vmem_limit = _vmem_budget_bytes()
    c_size = np.dtype(compute_dtype).itemsize

    D_pad = _round_up(D_in, 128)
    # Fit the requested tiles into the VMEM budget, then snap them to the dims.
    fit_budget = max(vmem_limit - 8 * 1024 * 1024, vmem_limit // 2)
    tile_b, tile_h = _fit_tiles_to_vmem(tile_b, tile_h, D_pad, c_size, fit_budget)
    tile_h, H_pad = _pick_tile(H, 128, tile_h)
    tile_b, B_pad = _pick_tile(B, 8, tile_b)
    # TODO(synk): on v7x, cap tile_b at B_pad//2 when the batch grid collapses to
    # one step so both TensorCores get work (needs a reliable core-count query).

    grid = (B_pad // tile_b, H_pad // tile_h)

    flops = 4 * B_pad * H_pad * D_pad                      # two matmuls, 2*M*N*K each
    bytes_accessed = (B_pad * D_pad * c_size               # x
                      + grid[0] * 2 * D_pad * H_pad * c_size   # W1+W2 re-streamed per batch tile
                      + grid[0] * (H_pad + D_pad) * 4          # biases
                      + B_pad * D_pad * 4)                     # f32 output

    ffn_call = pl.pallas_call(
        ffn_kernel,
        out_shape=jax.ShapeDtypeStruct((B_pad, D_pad), jnp.float32),
        grid_spec=pltpu.PrefetchScalarGridSpec(
            num_scalar_prefetch=0,
            grid=grid,
            in_specs=[
                pl.BlockSpec((tile_b, D_pad), lambda i, k: (i, 0)),  # x tile (resident over k)
                pl.BlockSpec((D_pad, tile_h), lambda i, k: (0, k)),  # W1^T column block
                pl.BlockSpec((1, tile_h),     lambda i, k: (0, k)),  # b1 block
                pl.BlockSpec((tile_h, D_pad), lambda i, k: (k, 0)),  # W2^T row block
                pl.BlockSpec((1, D_pad),      lambda i, k: (0, 0)),  # b2 (resident)
            ],
            out_specs=pl.BlockSpec((tile_b, D_pad), lambda i, k: (i, 0)),
        ),
        compiler_params=pltpu.CompilerParams(
            dimension_semantics=("parallel", "arbitrary"),
            vmem_limit_bytes=int(vmem_limit),
        ),
        cost_estimate=pl.CostEstimate(
            flops=int(flops), transcendentals=0,
            bytes_accessed=int(bytes_accessed)),
    )

    def prepare_params(w1, b1, w2, b2):
        # Done ONCE: transpose + pad + cast stays out of the per-call HBM traffic.
        w1_t = jnp.zeros((D_pad, H_pad), compute_dtype).at[:D_in, :H].set(
            jnp.asarray(w1).T.astype(compute_dtype))
        w2_t = jnp.zeros((H_pad, D_pad), compute_dtype).at[:H, :D_in].set(
            jnp.asarray(w2).T.astype(compute_dtype))
        b1_p = jnp.zeros((1, H_pad), jnp.float32).at[0, :H].set(
            jnp.asarray(b1).astype(jnp.float32))
        b2_p = jnp.zeros((1, D_pad), jnp.float32).at[0, :D_in].set(
            jnp.asarray(b2).astype(jnp.float32))
        return w1_t, b1_p, w2_t, b2_p

    def forward(x, params):
        w1_t, b1_p, w2_t, b2_p = params
        x_p = jnp.zeros((B_pad, D_pad), compute_dtype).at[:B, :D_in].set(
            x.astype(compute_dtype))
        out = ffn_call(x_p, w1_t, b1_p, w2_t, b2_p)[:B, :D_in]
        return out if out.dtype == out_dtype else out.astype(out_dtype)

    return prepare_params, forward


def ffn_pallas(x, w1, b1, w2, b2, **kwargs):
    """One-shot convenience wrapper (weight layout NOT hoisted -- prefer make_ffn)."""
    B, D_in = x.shape
    H = w1.shape[0]
    prepare, forward = make_ffn(B, D_in, H, out_dtype=x.dtype, **kwargs)
    return forward(x, prepare(w1, b1, w2, b2))


def xavier_uniform(key, fan_out, fan_in, dtype=jnp.float32):
    # Matches torch.nn.init.xavier_uniform_ for a (fan_out, fan_in) Linear weight.
    limit = math.sqrt(6.0 / (fan_in + fan_out))
    return jax.random.uniform(key, (fan_out, fan_in), dtype, -limit, limit)


if __name__ == "__main__":
    # Small shapes consistent with the module: batch=8, input_features=32, hidden=64.
    B, D_in, H = 8, 32, 64

    key = jax.random.PRNGKey(0)
    k_x, k_w1, k_b1, k_w2, k_b2 = jax.random.split(key, 5)

    x = jax.random.normal(k_x, (B, D_in), jnp.float32)

    # Deterministic params (xavier_uniform weights as in the module; biases like
    # torch's default Linear bias: uniform in +/- 1/sqrt(fan_in)).
    w1 = xavier_uniform(k_w1, H, D_in)                        # fc1.weight: (H, D_in)
    b1 = jax.random.uniform(k_b1, (H,), jnp.float32,
                            -1.0 / math.sqrt(D_in), 1.0 / math.sqrt(D_in))
    w2 = xavier_uniform(k_w2, D_in, H)                        # fc2.weight: (D_in, H)
    b2 = jax.random.uniform(k_b2, (D_in,), jnp.float32,
                            -1.0 / math.sqrt(H), 1.0 / math.sqrt(H))

    # Hoisted weight layout: prepared once, reused across calls.
    prepare, forward = make_ffn(B, D_in, H, out_dtype=jnp.float32)
    params = jax.block_until_ready(prepare(w1, b1, w2, b2))
    forward_jit = jax.jit(forward)

    out = jax.block_until_ready(forward_jit(x, params))
    assert out.shape == (B, D_in)

    # Reference 1: exact f32 forward (module semantics) -- loose tolerance since
    # the kernel uses bf16 matmul operands with f32 accumulation.
    xn, w1n, b1n, w2n, b2n = (np.asarray(a, np.float32) for a in (x, w1, b1, w2, b2))
    ref_f32 = np.maximum(xn @ w1n.T + b1n, 0.0) @ w2n.T + b2n
    assert np.allclose(np.asarray(out), ref_f32, atol=5e-2, rtol=5e-2), \
        "mismatch vs f32 reference"

    # Reference 2: same bf16-operand rounding as the kernel -- tight tolerance.
    def to_bf16_f32(a):
        return np.asarray(jnp.asarray(a).astype(jnp.bfloat16).astype(jnp.float32))
    xb, w1b, w2b = to_bf16_f32(xn), to_bf16_f32(w1n), to_bf16_f32(w2n)
    hb = np.maximum(xb @ w1b.T + b1n, 0.0)
    ref_bf16 = to_bf16_f32(hb) @ w2b.T + b2n
    assert np.allclose(np.asarray(out), ref_bf16, atol=1e-3, rtol=1e-3), \
        "mismatch vs bf16-operand reference"

    print("KERNEL_OK")
</pallas_src>

<mosaic_0001>
module attributes {stable_mosaic.version = 11 : i64} {
  func.func @ffn_kernel(%arg0: i32, %arg1: i32, %arg2: memref<8x128xbf16, #tpu.memory_space<vmem>>, %arg3: memref<128x128xbf16, #tpu.memory_space<vmem>>, %arg4: memref<1x128xf32, #tpu.memory_space<vmem>>, %arg5: memref<128x128xbf16, #tpu.memory_space<vmem>>, %arg6: memref<1x128xf32, #tpu.memory_space<vmem>>, %arg7: memref<8x128xf32, #tpu.memory_space<vmem>>) attributes {dimension_semantics = [#tpu.dimension_semantics<parallel>, #tpu.dimension_semantics<arbitrary>], iteration_bounds = array<i64: 1, 1>, scalar_prefetch = 0 : i64, scratch_operands = 0 : i64, tpu.core_type = #tpu.core_type<tc>, window_params = [{transform_indices = @transform_0, window_bounds = array<i64: 8, 128>}, {transform_indices = @transform_1, window_bounds = array<i64: 128, 128>}, {transform_indices = @transform_2, window_bounds = array<i64: 1, 128>}, {transform_indices = @transform_3, window_bounds = array<i64: 128, 128>}, {pipeline_mode = #tpu.pipeline_mode<synchronous>, transform_indices = @transform_4, window_bounds = array<i64: 1, 128>}, {transform_indices = @transform_5, window_bounds = array<i64: 8, 128>}]} {
    %c0 = arith.constant 0 : index
    %c0_0 = arith.constant 0 : index
    %0 = vector.load %arg2[%c0, %c0_0] : memref<8x128xbf16, #tpu.memory_space<vmem>>, vector<8x128xbf16>
    %c0_1 = arith.constant 0 : index
    %c0_2 = arith.constant 0 : index
    %1 = vector.load %arg3[%c0_1, %c0_2] : memref<128x128xbf16, #tpu.memory_space<vmem>>, vector<128x128xbf16>
    %cst = arith.constant dense<0.000000e+00> : vector<8x128xf32>
    %2 = tpu.matmul %0, %1, %cst {dimension_numbers = #tpu.dot_dimension_numbers<[1], [0], [0], [1], [0, 0, 1, 1], [], []>} : vector<8x128xbf16>, vector<128x128xbf16>, vector<8x128xf32> -> vector<8x128xf32>
    %c0_3 = arith.constant 0 : index
    %c0_4 = arith.constant 0 : index
    %3 = vector.load %arg4[%c0_3, %c0_4] : memref<1x128xf32, #tpu.memory_space<vmem>>, vector<1x128xf32>
    %4 = vector.broadcast %3 : vector<1x128xf32> to vector<8x128xf32>
    %5 = arith.addf %2, %4 : vector<8x128xf32>
    %cst_5 = arith.constant 0.000000e+00 : f32
    %6 = vector.broadcast %cst_5 : f32 to vector<8x128xf32>
    %7 = arith.maximumf %5, %6 : vector<8x128xf32>
    %8 = arith.truncf %7 : vector<8x128xf32> to vector<8x128xbf16>
    %c0_6 = arith.constant 0 : index
    %c0_7 = arith.constant 0 : index
    %9 = vector.load %arg5[%c0_6, %c0_7] : memref<128x128xbf16, #tpu.memory_space<vmem>>, vector<128x128xbf16>
    %cst_8 = arith.constant dense<0.000000e+00> : vector<8x128xf32>
    %10 = tpu.matmul %8, %9, %cst_8 {dimension_numbers = #tpu.dot_dimension_numbers<[1], [0], [0], [1], [0, 0, 1, 1], [], []>} : vector<8x128xbf16>, vector<128x128xbf16>, vector<8x128xf32> -> vector<8x128xf32>
    %c0_i32 = arith.constant 0 : i32
    %11 = arith.cmpi eq, %arg1, %c0_i32 : i32
    %12 = arith.extui %11 : i1 to i32
    %c0_i32_9 = arith.constant 0 : i32
    %13 = arith.cmpi ne, %12, %c0_i32_9 : i32
    scf.if %13 {
      %c0_14 = arith.constant 0 : index
      %c0_15 = arith.constant 0 : index
      %20 = vector.load %arg7[%c0_14, %c0_15] : memref<8x128xf32, #tpu.memory_space<vmem>>, vector<8x128xf32>
      tpu.vector_store %arg7[%c0_14, %c0_15], %10 {strides = array<i32>} : memref<8x128xf32, #tpu.memory_space<vmem>>, vector<8x128xf32>,
    } else {
    }
    %c0_i32_10 = arith.constant 0 : i32
    %14 = arith.cmpi ne, %arg1, %c0_i32_10 : i32
    %15 = arith.extui %14 : i1 to i32
    %c0_i32_11 = arith.constant 0 : i32
    %16 = arith.cmpi ne, %15, %c0_i32_11 : i32
    scf.if %16 {
      %c0_14 = arith.constant 0 : index
      %c0_15 = arith.constant 0 : index
      %20 = vector.load %arg7[%c0_14, %c0_15] : memref<8x128xf32, #tpu.memory_space<vmem>>, vector<8x128xf32>
      %21 = arith.addf %20, %10 : vector<8x128xf32>
      %c0_16 = arith.constant 0 : index
      %c0_17 = arith.constant 0 : index
      %22 = vector.load %arg7[%c0_16, %c0_17] : memref<8x128xf32, #tpu.memory_space<vmem>>, vector<8x128xf32>
      tpu.vector_store %arg7[%c0_16, %c0_17], %21 {strides = array<i32>} : memref<8x128xf32, #tpu.memory_space<vmem>>, vector<8x128xf32>,
    } else {
    }
    %c0_i32_12 = arith.constant 0 : i32
    %17 = arith.cmpi eq, %arg1, %c0_i32_12 : i32
    %18 = arith.extui %17 : i1 to i32
    %c0_i32_13 = arith.constant 0 : i32
    %19 = arith.cmpi ne, %18, %c0_i32_13 : i32
    scf.if %19 {
      %c0_14 = arith.constant 0 : index
      %c0_15 = arith.constant 0 : index
      %20 = vector.load %arg7[%c0_14, %c0_15] : memref<8x128xf32, #tpu.memory_space<vmem>>, vector<8x128xf32>
      %c0_16 = arith.constant 0 : index
      %c0_17 = arith.constant 0 : index
      %21 = vector.load %arg6[%c0_16, %c0_17] : memref<1x128xf32, #tpu.memory_space<vmem>>, vector<1x128xf32>
      %22 = vector.broadcast %21 : vector<1x128xf32> to vector<8x128xf32>
      %23 = arith.addf %20, %22 : vector<8x128xf32>
      %c0_18 = arith.constant 0 : index
      %c0_19 = arith.constant 0 : index
      %24 = vector.load %arg7[%c0_18, %c0_19] : memref<8x128xf32, #tpu.memory_space<vmem>>, vector<8x128xf32>
      tpu.vector_store %arg7[%c0_18, %c0_19], %23 {strides = array<i32>} : memref<8x128xf32, #tpu.memory_space<vmem>>, vector<8x128xf32>,
    } else {
    }
    return
  }
  func.func @transform_0(%arg0: i32, %arg1: i32) -> (i32, i32) {
    %c0_i32 = arith.constant 0 : i32
    %c0_i32_0 = arith.constant 0 : i32
    return %arg0, %c0_i32 : i32, i32
  }
  func.func @transform_1(%arg0: i32, %arg1: i32) -> (i32, i32) {
    %c0_i32 = arith.constant 0 : i32
    %c0_i32_0 = arith.constant 0 : i32
    return %c0_i32, %arg1 : i32, i32
  }
  func.func @transform_2(%arg0: i32, %arg1: i32) -> (i32, i32) {
    %c0_i32 = arith.constant 0 : i32
    %c0_i32_0 = arith.constant 0 : i32
    return %c0_i32, %arg1 : i32, i32
  }
  func.func @transform_3(%arg0: i32, %arg1: i32) -> (i32, i32) {
    %c0_i32 = arith.constant 0 : i32
    %c0_i32_0 = arith.constant 0 : i32
    return %arg1, %c0_i32 : i32, i32
  }
  func.func @transform_4(%arg0: i32, %arg1: i32) -> (i32, i32) {
    %c0_i32 = arith.constant 0 : i32
    %c0_i32_0 = arith.constant 0 : i32
    %c0_i32_1 = arith.constant 0 : i32
    return %c0_i32, %c0_i32_0 : i32, i32
  }
  func.func @transform_5(%arg0: i32, %arg1: i32) -> (i32, i32) {
    %c0_i32 = arith.constant 0 : i32
    %c0_i32_0 = arith.constant 0 : i32
    return %arg0, %c0_i32 : i32, i32
  }
}

</mosaic_0001>

<llo_original>
// kernel: forward.1
$region0: #{forward.1}
  #allocation0 [shape = 'u32[]', space=smem, size = 0x4, offset = 0x4, fixed_abs, tag = 'smem constant byte address 0x4 - core index']
  #allocation1 [shape = 'u32[72,128]{1,0:T(1,128)}', space=vmem, size = 0x9000, scoped, tag = 'internal scratch']
  %s0 = inlined_call_operand.vmem [shape: bf16[8,128], index: 0, kind: input, shape index: {}]
  %s1 = inlined_call_operand.hbm [shape: bf16[128,128], index: 1, kind: input, shape index: {}]
  %s2 = inlined_call_operand.vmem [shape: f32[1,128], index: 2, kind: input, shape index: {}]
  %s3 = inlined_call_operand.hbm [shape: bf16[128,128], index: 3, kind: input, shape index: {}]
  %s4 = inlined_call_operand.vmem [shape: f32[1,128], index: 4, kind: input, shape index: {}]
  %s5 = inlined_call_operand.hbm [shape: f32[8,128], index: 5, kind: output, shape index: {}]
  %s6 = sld [smem:[#allocation0]]
  $region50: #{forward.1} parent=0
    _
  %s8 = ssub.s32 1, %s6
  %s9 = scalar_select 0, %s8, %s6
  $region1: #{forward.1} parent=0
    #allocation2 [shape = 'u8[32768]{0}', space=vmem, size = 0x8000, scoped, tag = 'input window, operand 1, single buffered']
    #allocation3 [shape = 's32[1]{0}', space=sflag, size = 0x4, scoped, tag = 'scoped memory for forward.1']
    #allocation4 [shape = 's32[1]{0}', space=sflag, size = 0x4, scoped, tag = 'scoped memory for forward.1']
    #allocation5 [shape = 'u8[32768]{0}', space=vmem, size = 0x8000, scoped, tag = 'input window, operand 3, single buffered']
    #allocation6 [shape = 's32[1]{0}', space=sflag, size = 0x4, scoped, tag = 'scoped memory for forward.1']
    #allocation7 [shape = 'u8[4096]{0}', space=vmem, size = 0x1000, scoped, tag = 'output window, operand 0, single buffered']
    %10 = vsyncpa [#allocation3], 0
    %11 = vsyncpa [#allocation6], 0
    %12 = vsyncpa [#allocation4], 0
    // Predicated region
    $region2: #{forward.1} parent=1 // pred_check
      _
    $region3: #{forward.1} parent=1 // pred_check_branch
      %14 = sbr.rel (0) target = $region5
    $region4: #{forward.1} parent=1 // pred_region
      _
    $region5: #{forward.1} parent=1 // pred_fallthru
      _
    // Predicated region
    $region6: #{forward.1} parent=1 // pred_check
      _
    $region7: #{forward.1} parent=1 // pred_check_branch
      %16 = sbr.rel (0) target = $region9
    $region8: #{forward.1} parent=1 // pred_region
      %18 = vsyncadd [#allocation3], 0
      %s19 = sshll.u32 %s1, 4
      %s20 = int_to_ptr.hbm [resolvable:$true] %s19
      %s21 = sshll.u32 [#allocation2], 4
      %s22 = int_to_ptr.vmem [resolvable:$true] %s21
      %27 = dma.hbm_to_vmem [thread:$0]  %s20, 1024, %s22, [#allocation3], 64, 64, 4
    $region9: #{forward.1} parent=1 // pred_fallthru
      _
    // Predicated region
    $region10: #{forward.1} parent=1 // pred_check
      _
    $region11: #{forward.1} parent=1 // pred_check_branch
      %29 = sbr.rel (0) target = $region13
    $region12: #{forward.1} parent=1 // pred_region
      _
    $region13: #{forward.1} parent=1 // pred_fallthru
      _
    // Predicated region
    $region14: #{forward.1} parent=1 // pred_check
      _
    $region15: #{forward.1} parent=1 // pred_check_branch
      %31 = sbr.rel (0) target = $region17
    $region16: #{forward.1} parent=1 // pred_region
      %33 = vsyncadd [#allocation6], 0
      %s34 = sshll.u32 %s3, 4
      %s35 = int_to_ptr.hbm [resolvable:$true] %s34
      %s36 = sshll.u32 [#allocation5], 4
      %s37 = int_to_ptr.vmem [resolvable:$true] %s36
      %42 = dma.hbm_to_vmem [thread:$0]  %s35, 1024, %s37, [#allocation6], 64, 64, 4
    $region17: #{forward.1} parent=1 // pred_fallthru
      _
    // Predicated region
    $region18: #{forward.1} parent=1 // pred_check
      _
    $region19: #{forward.1} parent=1 // pred_check_branch
      %44 = sbr.rel (0) target = $region21
    $region20: #{forward.1} parent=1 // pred_region
      _
    $region21: #{forward.1} parent=1 // pred_fallthru
      _
    // Predicated region
    $region22: #{forward.1} parent=1 // pred_check
      _
    $region23: #{forward.1} parent=1 // pred_check_branch
      %46 = sbr.rel (0) target = $region25
    $region24: #{forward.1} parent=1 // pred_region
      %48 = dma.done [#allocation3], 1024
    $region25: #{forward.1} parent=1 // pred_fallthru
      _
    // Predicated region
    $region26: #{forward.1} parent=1 // pred_check
      _
    $region27: #{forward.1} parent=1 // pred_check_branch
      %50 = sbr.rel (0) target = $region29
    $region28: #{forward.1} parent=1 // pred_region
      %52 = dma.done [#allocation6], 1024
    $region29: #{forward.1} parent=1 // pred_fallthru
      _
    %v53 = vld [vmem:[%s0] sm:$0xf]
    %v54 = vld [vmem:[#allocation2] sm:$0xf]
    %v55 = vld [vmem:[#allocation2 + $0x4] sm:$0xf]
    %v56 = vld [vmem:[#allocation2 + $0x8] sm:$0xf]
    %v57 = vld [vmem:[#allocation2 + $0xc] sm:$0xf]
    %v58 = vld [vmem:[#allocation2 + $0x10] sm:$0xf]
    %v59 = vld [vmem:[#allocation2 + $0x14] sm:$0xf]
    %v60 = vld [vmem:[#allocation2 + $0x18] sm:$0xf]
    %v61 = vld [vmem:[#allocation2 + $0x1c] sm:$0xf]
    %v62 = vld [vmem:[#allocation2 + $0x20] sm:$0xf]
    %v63 = vld [vmem:[#allocation2 + $0x24] sm:$0xf]
    %v64 = vld [vmem:[#allocation2 + $0x28] sm:$0xf]
    %v65 = vld [vmem:[#allocation2 + $0x2c] sm:$0xf]
    %v66 = vld [vmem:[#allocation2 + $0x30] sm:$0xf]
    %v67 = vld [vmem:[#allocation2 + $0x34] sm:$0xf]
    %v68 = vld [vmem:[#allocation2 + $0x38] sm:$0xf]
    %v69 = vld [vmem:[#allocation2 + $0x3c] sm:$0xf]
    %v70 = vld [vmem:[%s2] sm:$0x1]
    %v72 = vperm.slane %v70, 0
    %v90 = vunpack.c.l.b16 %v54
    %v91 = vunpack.c.l.b16 %v55
    %v92 = vunpack.c.l.b16 %v56
    %v93 = vunpack.c.l.b16 %v57
    %v94 = vunpack.c.l.b16 %v58
    %v95 = vunpack.c.l.b16 %v59
    %v96 = vunpack.c.l.b16 %v60
    %v97 = vunpack.c.l.b16 %v61
    %v98 = vunpack.c.l.b16 %v62
    %v99 = vunpack.c.l.b16 %v63
    %v100 = vunpack.c.l.b16 %v64
    %v101 = vunpack.c.l.b16 %v65
    %v102 = vunpack.c.l.b16 %v66
    %v103 = vunpack.c.l.b16 %v67
    %v104 = vunpack.c.l.b16 %v68
    %v105 = vunpack.c.l.b16 %v69
    %v106 = vpack.c.b16 %v91, %v90
    %v107 = vpack.c.b16 %v93, %v92
    %v108 = vpack.c.b16 %v95, %v94
    %v109 = vpack.c.b16 %v97, %v96
    %v110 = vpack.c.b16 %v99, %v98
    %v111 = vpack.c.b16 %v101, %v100
    %v112 = vpack.c.b16 %v103, %v102
    %v113 = vpack.c.b16 %v105, %v104
    %122 = vmatpush.bf16.msra.mxu0 %v113
    %123 = vmatpush.bf16.msra.mxu0 %v112
    %124 = vmatpush.bf16.msra.mxu0 %v111
    %125 = vmatpush.bf16.msra.mxu0 %v110
    %126 = vmatpush.bf16.msra.mxu0 %v109
    %127 = vmatpush.bf16.msra.mxu0 %v108
    %128 = vmatpush.bf16.msra.mxu0 %v107
    %129 = vmatpush.bf16.msra.mxu0 %v106
    %130 = vmatmul.bf16.gmra.mxu0 %v53
    %v131 = vpop.f32.mrf.mxu0
    %v132 = vadd.f32 %v72, %v131
    %v133 = vpop.f32.mrf.mxu0
    %134 = vdwg.mxu0
    %v135 = vmax.f32 %v132, 0.0
    %v136 = vpack.c.bf16 %v135, %v135
    %v137 = vld [vmem:[#allocation5] sm:$0xf]
    %v138 = vld [vmem:[#allocation5 + $0x4] sm:$0xf]
    %v139 = vld [vmem:[#allocation5 + $0x8] sm:$0xf]
    %v140 = vld [vmem:[#allocation5 + $0xc] sm:$0xf]
    %v141 = vld [vmem:[#allocation5 + $0x10] sm:$0xf]
    %v142 = vld [vmem:[#allocation5 + $0x14] sm:$0xf]
    %v143 = vld [vmem:[#allocation5 + $0x18] sm:$0xf]
    %v144 = vld [vmem:[#allocation5 + $0x1c] sm:$0xf]
    %v145 = vld [vmem:[#allocation5 + $0x20] sm:$0xf]
    %v146 = vld [vmem:[#allocation5 + $0x24] sm:$0xf]
    %v147 = vld [vmem:[#allocation5 + $0x28] sm:$0xf]
    %v148 = vld [vmem:[#allocation5 + $0x2c] sm:$0xf]
    %v149 = vld [vmem:[#allocation5 + $0x30] sm:$0xf]
    %v150 = vld [vmem:[#allocation5 + $0x34] sm:$0xf]
    %v151 = vld [vmem:[#allocation5 + $0x38] sm:$0xf]
    %v152 = vld [vmem:[#allocation5 + $0x3c] sm:$0xf]
    %v169 = vunpack.c.l.b16 %v137
    %v170 = vunpack.c.l.b16 %v138
    %v171 = vunpack.c.l.b16 %v139
    %v172 = vunpack.c.l.b16 %v140
    %v173 = vunpack.c.l.b16 %v141
    %v174 = vunpack.c.l.b16 %v142
    %v175 = vunpack.c.l.b16 %v143
    %v176 = vunpack.c.l.b16 %v144
    %v177 = vunpack.c.l.b16 %v145
    %v178 = vunpack.c.l.b16 %v146
    %v179 = vunpack.c.l.b16 %v147
    %v180 = vunpack.c.l.b16 %v148
    %v181 = vunpack.c.l.b16 %v149
    %v182 = vunpack.c.l.b16 %v150
    %v183 = vunpack.c.l.b16 %v151
    %v184 = vunpack.c.l.b16 %v152
    %v185 = vpack.c.b16 %v170, %v169
    %v186 = vpack.c.b16 %v172, %v171
    %v187 = vpack.c.b16 %v174, %v173
    %v188 = vpack.c.b16 %v176, %v175
    %v189 = vpack.c.b16 %v178, %v177
    %v190 = vpack.c.b16 %v180, %v179
    %v191 = vpack.c.b16 %v182, %v181
    %v192 = vpack.c.b16 %v184, %v183
    %201 = vmatpush.bf16.msra.mxu0 %v192
    %202 = vmatpush.bf16.msra.mxu0 %v191
    %203 = vmatpush.bf16.msra.mxu0 %v190
    %204 = vmatpush.bf16.msra.mxu0 %v189
    %205 = vmatpush.bf16.msra.mxu0 %v188
    %206 = vmatpush.bf16.msra.mxu0 %v187
    %207 = vmatpush.bf16.msra.mxu0 %v186
    %208 = vmatpush.bf16.msra.mxu0 %v185
    %209 = vmatmul.bf16.gmra.mxu0 %v136
    %v210 = vpop.f32.mrf.mxu0
    %v211 = vadd.f32 0.0, %v210
    %v212 = vpop.f32.mrf.mxu0
    %213 = vdwg.mxu0
    %p214 = scmp.eq.s32.totalorder 0, 0
    // Predicated region
    $region30: #{forward.1} parent=1 // pred_check
      %p215 = pneg %p214
    $region31: #{forward.1} parent=1 // pred_check_branch
      %217 = sbr.rel (%p215) target = $region33
    $region32: #{forward.1} parent=1 // pred_region
      %218 = vst [vmem:[#allocation7] sm:$0xff] %v211
    $region33: #{forward.1} parent=1 // pred_fallthru
      _
    %p219 = scmp.ne.s32.totalorder 0, 0
    // Predicated region
    $region34: #{forward.1} parent=1 // pred_check
      %p220 = pneg %p219
    $region35: #{forward.1} parent=1 // pred_check_branch
      %222 = sbr.rel (%p220) target = $region37
    $region36: #{forward.1} parent=1 // pred_region
      %v223 = vld [vmem:[#allocation7] sm:$0xff]
      %v224 = vadd.f32 %v223, %v211
      %225 = vst [vmem:[#allocation7] sm:$0xff] %v224
    $region37: #{forward.1} parent=1 // pred_fallthru
      _
    // Predicated region
    $region38: #{forward.1} parent=1 // pred_check
      %p226 = pneg %p214
    $region39: #{forward.1} parent=1 // pred_check_branch
      %228 = sbr.rel (%p226) target = $region41
    $region40: #{forward.1} parent=1 // pred_region
      %v229 = vld [vmem:[#allocation7] sm:$0xff]
      %v230 = vld [vmem:[%s4] sm:$0x1]
      %v232 = vperm.slane %v230, 0
      %v234 = vadd.f32 %v229, %v232
      %235 = vst [vmem:[#allocation7] sm:$0xff] %v234
    $region41: #{forward.1} parent=1 // pred_fallthru
      _
    // Predicated region
    $region42: #{forward.1} parent=1 // pred_check
      _
    $region43: #{forward.1} parent=1 // pred_check_branch
      %237 = sbr.rel (0) target = $region45
    $region44: #{forward.1} parent=1 // pred_region
      %239 = vsyncadd [#allocation4], 0
      %s241 = sshll.u32 [#allocation7], 4
      %s242 = int_to_ptr.vmem [resolvable:$true] %s241
      %s243 = sshll.u32 %s5, 4
      %s244 = int_to_ptr.hbm [resolvable:$true] %s243
      %246 = dma.vmem_to_hbm [thread:$0]  %s242, 128, %s244, [#allocation4]
    $region45: #{forward.1} parent=1 // pred_fallthru
      _
    // Predicated region
    $region46: #{forward.1} parent=1 // pred_check
      _
    $region47: #{forward.1} parent=1 // pred_check_branch
      %248 = sbr.rel (0) target = $region49
    $region48: #{forward.1} parent=1 // pred_region
      %250 = dma.done [#allocation4], 128
    $region49: #{forward.1} parent=1 // pred_fallthru
      _
    %251 = vsyncpa [#allocation3], 1
    %252 = vsyncpa [#allocation6], 1
    %253 = vsyncpa [#allocation4], 1

</llo_original>
